<compile_context>
chip_gen: v5e
topology: v5e:2x2
jax: 0.10.0
libtpu: 0.0.40
codegen_flags: <defaults>
</compile_context>

<pallas_src>
import functools

import jax
import jax.numpy as jnp
from jax.experimental import pallas as pl
from jax.experimental.pallas import tpu as pltpu

HID1 = 128
HID2 = 64
SUBLANE = 8                       # f32 sublane granularity for the batch tile
DEFAULT_BLOCK_B = 8192            # large batch tile (amortizes per-step overhead)
VMEM_PIPELINE_BUDGET = 40 << 20   # pipeline-buffer budget (fits v7x's 64 MiB VMEM)
VMEM_LIMIT_BYTES = 48 << 20


def _round_up(x, m):
    return ((x + m - 1) // m) * m


def _dqn_mlp_kernel(x_ref, w1_ref, b1_ref, w2_ref, b2_ref, w3_ref, b3_ref, o_ref):
    # x block: [TB, input_dim] f32 -> cast to bf16 in-kernel (VPU slack).
    x = x_ref[...].astype(jnp.bfloat16)
    h1 = jnp.dot(x, w1_ref[...], preferred_element_type=jnp.float32) + b1_ref[...]
    h1 = jnp.maximum(h1, 0.0)                                     # relu(fc1), f32
    h2 = jnp.dot(h1.astype(jnp.bfloat16), w2_ref[...],
                 preferred_element_type=jnp.float32) + b2_ref[...]
    h2 = jnp.maximum(h2, 0.0)                                     # relu(fc2), f32
    y = jnp.dot(h2.astype(jnp.bfloat16), w3_ref[...],
                preferred_element_type=jnp.float32) + b3_ref[...]
    o_ref[...] = y                                                # [TB, n_actions] f32


def prepare_params(params):
    """One-time parameter prep (hoisted out of the per-call path):
    transpose to [in, out] layout, bias -> [1, out], cast matmul operands to
    bf16. Returns arrays only (no Python scalars) so it jits cleanly."""
    w1, b1 = params["fc1"]
    w2, b2 = params["fc2"]
    w3, b3 = params["out"]
    return {
        "w1": jnp.asarray(w1.T, jnp.bfloat16),         # [input_dim, 128]
        "b1": jnp.asarray(b1[None, :], jnp.float32),   # [1, 128]
        "w2": jnp.asarray(w2.T, jnp.bfloat16),         # [128, 64]
        "b2": jnp.asarray(b2[None, :], jnp.float32),   # [1, 64]
        "w3": jnp.asarray(w3.T, jnp.bfloat16),         # [64, n_actions]
        "b3": jnp.asarray(b3[None, :], jnp.float32),   # [1, n_actions]
    }


def _choose_tile(B, input_dim, n_actions, block_b):
    """Pick a batch tile that (a) minimizes pad waste, (b) fits the VMEM
    pipeline budget, and (c) gives >= 2 grid steps when the batch is big
    enough (so v7x megacore gets work on both TensorCores)."""
    num_tiles = pl.cdiv(B, block_b)
    if num_tiles == 1 and B >= 2 * SUBLANE:
        num_tiles = 2
    tb = _round_up(pl.cdiv(B, num_tiles), SUBLANE)

    # Resident weights/biases (count double-buffered to be conservative).
    weight_bytes = 2 * (input_dim * HID1 * 2 + HID1 * 4
                        + HID1 * HID2 * 2 + HID2 * 4
                        + HID2 * n_actions * 2 + n_actions * 4)
    # Per-row pipeline bytes: x double-buffer (f32) + out double-buffer (f32).
    per_row = 2 * input_dim * 4 + 2 * n_actions * 4
    tb_cap = max(SUBLANE,
                 ((VMEM_PIPELINE_BUDGET - weight_bytes) // per_row) // SUBLANE * SUBLANE)
    tb = min(tb, tb_cap)

    num_tiles = pl.cdiv(B, tb)
    b_pad = num_tiles * tb
    return tb, b_pad


@functools.partial(jax.jit, static_argnames=("block_b",))
def dqn_mlp_forward(x, prepared, *, block_b=DEFAULT_BLOCK_B):
    """x: [B, input_dim]. Returns [B, n_actions] float32."""
    w1, b1 = prepared["w1"], prepared["b1"]
    w2, b2 = prepared["w2"], prepared["b2"]
    w3, b3 = prepared["w3"], prepared["b3"]

    B = x.shape[0]
    input_dim = w1.shape[0]      # static ints (array shapes), safe under jit
    n_actions = w3.shape[1]

    x = x.astype(jnp.float32)    # matches torch `x.float()`; bf16 cast is in-kernel

    tb, b_pad = _choose_tile(B, input_dim, n_actions, block_b)
    if b_pad != B:
        x = jnp.pad(x, ((0, b_pad - B), (0, 0)))
    grid = (b_pad // tb,)

    const = lambda i: (0, 0)     # weights/biases resident across all grid steps

    cost = pl.CostEstimate(
        flops=2 * b_pad * (input_dim * HID1 + HID1 * HID2 + HID2 * n_actions),
        transcendentals=0,
        bytes_accessed=b_pad * 4 * (input_dim + n_actions)
        + input_dim * HID1 * 2 + HID1 * HID2 * 2 + HID2 * n_actions * 2,
    )

    out = pl.pallas_call(
        _dqn_mlp_kernel,
        out_shape=jax.ShapeDtypeStruct((b_pad, n_actions), jnp.float32),
        grid=grid,
        in_specs=[
            pl.BlockSpec((tb, input_dim), lambda i: (i, 0)),   # x tile (f32)
            pl.BlockSpec((input_dim, HID1), const),            # w1 (bf16)
            pl.BlockSpec((1, HID1), const),                    # b1 (f32)
            pl.BlockSpec((HID1, HID2), const),                 # w2 (bf16)
            pl.BlockSpec((1, HID2), const),                    # b2 (f32)
            pl.BlockSpec((HID2, n_actions), const),            # w3 (bf16)
            pl.BlockSpec((1, n_actions), const),               # b3 (f32)
        ],
        out_specs=pl.BlockSpec((tb, n_actions), lambda i: (i, 0)),
        compiler_params=pltpu.CompilerParams(
            dimension_semantics=("parallel",),   # shard batch across TCs (v7x)
            vmem_limit_bytes=VMEM_LIMIT_BYTES,
        ),
        cost_estimate=cost,
    )(x, w1, b1, w2, b2, w3, b3)

    return out if b_pad == B else out[:B]


def init_params(key, input_dim, n_actions):
    """nn.Linear-style init (uniform +/- 1/sqrt(fan_in)), PyTorch shapes."""
    def linear(key, fan_in, fan_out):
        kw, kb = jax.random.split(key)
        bound = 1.0 / jnp.sqrt(fan_in)
        w = jax.random.uniform(kw, (fan_out, fan_in), jnp.float32, -bound, bound)
        b = jax.random.uniform(kb, (fan_out,), jnp.float32, -bound, bound)
        return w, b

    k1, k2, k3 = jax.random.split(key, 3)
    return {
        "fc1": linear(k1, input_dim, HID1),
        "fc2": linear(k2, HID1, HID2),
        "out": linear(k3, HID2, n_actions),
    }


def reference_forward(x, params):
    """Pure-JAX f32 reference of the PyTorch forward."""
    w1, b1 = params["fc1"]
    w2, b2 = params["fc2"]
    w3, b3 = params["out"]
    h1 = jnp.maximum(x @ w1.T + b1, 0.0)
    h2 = jnp.maximum(h1 @ w2.T + b2, 0.0)
    return h2 @ w3.T + b3


if __name__ == "__main__":
    key = jax.random.PRNGKey(0)
    k_param, k_x = jax.random.split(key)

    batch = 8
    input_dim = 16
    n_actions = 4

    params = init_params(k_param, input_dim, n_actions)
    prepared = prepare_params(params)
    x = jax.random.normal(k_x, (batch, input_dim), jnp.float32)

    y = dqn_mlp_forward(x, prepared)
    y = jax.block_until_ready(y)

    y_ref = reference_forward(x, params)
    assert y.shape == (batch, n_actions), y.shape
    # bf16 matmul operands (f32 accumulation) -> loosened tolerance vs f32 ref.
    assert jnp.allclose(y, y_ref, atol=5e-2, rtol=5e-2), (
        float(jnp.max(jnp.abs(y - y_ref))))

    print("KERNEL_OK")
</pallas_src>

<mosaic_0001>
module attributes {stable_mosaic.version = 11 : i64} {
  func.func @_dqn_mlp_kernel(%arg0: i32, %arg1: memref<8x16xf32, #tpu.memory_space<vmem>>, %arg2: memref<16x128xbf16, #tpu.memory_space<vmem>>, %arg3: memref<1x128xf32, #tpu.memory_space<vmem>>, %arg4: memref<128x64xbf16, #tpu.memory_space<vmem>>, %arg5: memref<1x64xf32, #tpu.memory_space<vmem>>, %arg6: memref<64x4xbf16, #tpu.memory_space<vmem>>, %arg7: memref<1x4xf32, #tpu.memory_space<vmem>>, %arg8: memref<8x4xf32, #tpu.memory_space<vmem>>) attributes {dimension_semantics = [#tpu.dimension_semantics<parallel>], iteration_bounds = array<i64: 1>, scalar_prefetch = 0 : i64, scratch_operands = 0 : i64, tpu.core_type = #tpu.core_type<tc>, window_params = [{transform_indices = @transform_0, window_bounds = array<i64: 8, 16>}, {pipeline_mode = #tpu.pipeline_mode<synchronous>, transform_indices = @transform_1, window_bounds = array<i64: 16, 128>}, {pipeline_mode = #tpu.pipeline_mode<synchronous>, transform_indices = @transform_2, window_bounds = array<i64: 1, 128>}, {pipeline_mode = #tpu.pipeline_mode<synchronous>, transform_indices = @transform_3, window_bounds = array<i64: 128, 64>}, {pipeline_mode = #tpu.pipeline_mode<synchronous>, transform_indices = @transform_4, window_bounds = array<i64: 1, 64>}, {pipeline_mode = #tpu.pipeline_mode<synchronous>, transform_indices = @transform_5, window_bounds = array<i64: 64, 4>}, {pipeline_mode = #tpu.pipeline_mode<synchronous>, transform_indices = @transform_6, window_bounds = array<i64: 1, 4>}, {transform_indices = @transform_7, window_bounds = array<i64: 8, 4>}]} {
    %c0 = arith.constant 0 : index
    %c0_0 = arith.constant 0 : index
    %0 = vector.load %arg1[%c0, %c0_0] : memref<8x16xf32, #tpu.memory_space<vmem>>, vector<8x16xf32>
    %1 = arith.truncf %0 : vector<8x16xf32> to vector<8x16xbf16>
    %c0_1 = arith.constant 0 : index
    %c0_2 = arith.constant 0 : index
    %2 = vector.load %arg2[%c0_1, %c0_2] : memref<16x128xbf16, #tpu.memory_space<vmem>>, vector<16x128xbf16>
    %cst = arith.constant dense<0.000000e+00> : vector<8x128xf32>
    %3 = tpu.matmul %1, %2, %cst {dimension_numbers = #tpu.dot_dimension_numbers<[1], [0], [0], [1], [0, 0, 1, 1], [], []>} : vector<8x16xbf16>, vector<16x128xbf16>, vector<8x128xf32> -> vector<8x128xf32>
    %c0_3 = arith.constant 0 : index
    %c0_4 = arith.constant 0 : index
    %4 = vector.load %arg3[%c0_3, %c0_4] : memref<1x128xf32, #tpu.memory_space<vmem>>, vector<1x128xf32>
    %5 = vector.broadcast %4 : vector<1x128xf32> to vector<8x128xf32>
    %6 = arith.addf %3, %5 : vector<8x128xf32>
    %cst_5 = arith.constant 0.000000e+00 : f32
    %7 = vector.broadcast %cst_5 : f32 to vector<8x128xf32>
    %8 = arith.maximumf %6, %7 : vector<8x128xf32>
    %9 = arith.truncf %8 : vector<8x128xf32> to vector<8x128xbf16>
    %c0_6 = arith.constant 0 : index
    %c0_7 = arith.constant 0 : index
    %10 = vector.load %arg4[%c0_6, %c0_7] : memref<128x64xbf16, #tpu.memory_space<vmem>>, vector<128x64xbf16>
    %cst_8 = arith.constant dense<0.000000e+00> : vector<8x64xf32>
    %11 = tpu.matmul %9, %10, %cst_8 {dimension_numbers = #tpu.dot_dimension_numbers<[1], [0], [0], [1], [0, 0, 1, 1], [], []>} : vector<8x128xbf16>, vector<128x64xbf16>, vector<8x64xf32> -> vector<8x64xf32>
    %c0_9 = arith.constant 0 : index
    %c0_10 = arith.constant 0 : index
    %12 = vector.load %arg5[%c0_9, %c0_10] : memref<1x64xf32, #tpu.memory_space<vmem>>, vector<1x64xf32>
    %13 = vector.broadcast %12 : vector<1x64xf32> to vector<8x64xf32>
    %14 = arith.addf %11, %13 : vector<8x64xf32>
    %cst_11 = arith.constant 0.000000e+00 : f32
    %15 = vector.broadcast %cst_11 : f32 to vector<8x64xf32>
    %16 = arith.maximumf %14, %15 : vector<8x64xf32>
    %17 = arith.truncf %16 : vector<8x64xf32> to vector<8x64xbf16>
    %c0_12 = arith.constant 0 : index
    %c0_13 = arith.constant 0 : index
    %18 = vector.load %arg6[%c0_12, %c0_13] : memref<64x4xbf16, #tpu.memory_space<vmem>>, vector<64x4xbf16>
    %cst_14 = arith.constant dense<0.000000e+00> : vector<8x4xf32>
    %19 = tpu.matmul %17, %18, %cst_14 {dimension_numbers = #tpu.dot_dimension_numbers<[1], [0], [0], [1], [0, 0, 1, 1], [], []>} : vector<8x64xbf16>, vector<64x4xbf16>, vector<8x4xf32> -> vector<8x4xf32>
    %c0_15 = arith.constant 0 : index
    %c0_16 = arith.constant 0 : index
    %20 = vector.load %arg7[%c0_15, %c0_16] : memref<1x4xf32, #tpu.memory_space<vmem>>, vector<1x4xf32>
    %21 = vector.broadcast %20 : vector<1x4xf32> to vector<8x4xf32>
    %22 = arith.addf %19, %21 : vector<8x4xf32>
    %c0_17 = arith.constant 0 : index
    %c0_18 = arith.constant 0 : index
    %23 = vector.load %arg8[%c0_17, %c0_18] : memref<8x4xf32, #tpu.memory_space<vmem>>, vector<8x4xf32>
    tpu.vector_store %arg8[%c0_17, %c0_18], %22 {strides = array<i32>} : memref<8x4xf32, #tpu.memory_space<vmem>>, vector<8x4xf32>,
    return
  }
  func.func @transform_0(%arg0: i32) -> (i32, i32) {
    %c0_i32 = arith.constant 0 : i32
    %c0_i32_0 = arith.constant 0 : i32
    return %arg0, %c0_i32 : i32, i32
  }
  func.func @transform_1(%arg0: i32) -> (i32, i32) {
    %c0_i32 = arith.constant 0 : i32
    %c0_i32_0 = arith.constant 0 : i32
    %c0_i32_1 = arith.constant 0 : i32
    return %c0_i32, %c0_i32_0 : i32, i32
  }
  func.func @transform_2(%arg0: i32) -> (i32, i32) {
    %c0_i32 = arith.constant 0 : i32
    %c0_i32_0 = arith.constant 0 : i32
    %c0_i32_1 = arith.constant 0 : i32
    return %c0_i32, %c0_i32_0 : i32, i32
  }
  func.func @transform_3(%arg0: i32) -> (i32, i32) {
    %c0_i32 = arith.constant 0 : i32
    %c0_i32_0 = arith.constant 0 : i32
    %c0_i32_1 = arith.constant 0 : i32
    return %c0_i32, %c0_i32_0 : i32, i32
  }
  func.func @transform_4(%arg0: i32) -> (i32, i32) {
    %c0_i32 = arith.constant 0 : i32
    %c0_i32_0 = arith.constant 0 : i32
    %c0_i32_1 = arith.constant 0 : i32
    return %c0_i32, %c0_i32_0 : i32, i32
  }
  func.func @transform_5(%arg0: i32) -> (i32, i32) {
    %c0_i32 = arith.constant 0 : i32
    %c0_i32_0 = arith.constant 0 : i32
    %c0_i32_1 = arith.constant 0 : i32
    return %c0_i32, %c0_i32_0 : i32, i32
  }
  func.func @transform_6(%arg0: i32) -> (i32, i32) {
    %c0_i32 = arith.constant 0 : i32
    %c0_i32_0 = arith.constant 0 : i32
    %c0_i32_1 = arith.constant 0 : i32
    return %c0_i32, %c0_i32_0 : i32, i32
  }
  func.func @transform_7(%arg0: i32) -> (i32, i32) {
    %c0_i32 = arith.constant 0 : i32
    %c0_i32_0 = arith.constant 0 : i32
    return %arg0, %c0_i32 : i32, i32
  }
}

</mosaic_0001>

<llo_original>
// kernel: dqn_mlp_forward.1
$region0: #{dqn_mlp_forward.1}
  #allocation0 [shape = 'u32[]', space=smem, size = 0x4, offset = 0x4, fixed_abs, tag = 'smem constant byte address 0x4 - core index']
  #allocation1 [shape = 'u32[72,128]{1,0:T(1,128)}', space=vmem, size = 0x9000, scoped, tag = 'internal scratch']
  %s0 = inlined_call_operand.vmem [shape: f32[8,16], index: 0, kind: input, shape index: {}]
  %s1 = inlined_call_operand.vmem [shape: bf16[16,128], index: 1, kind: input, shape index: {}]
  %s2 = inlined_call_operand.vmem [shape: f32[1,128], index: 2, kind: input, shape index: {}]
  %s3 = inlined_call_operand.vmem [shape: bf16[128,64], index: 3, kind: input, shape index: {}]
  %s4 = inlined_call_operand.vmem [shape: f32[1,64], index: 4, kind: input, shape index: {}]
  %s5 = inlined_call_operand.vmem [shape: bf16[64,4], index: 5, kind: input, shape index: {}]
  %s6 = inlined_call_operand.vmem [shape: f32[1,4], index: 6, kind: input, shape index: {}]
  %s7 = inlined_call_operand.vmem [shape: f32[8,4], index: 7, kind: output, shape index: {}]
  %s8 = sld [smem:[#allocation0]]
  $region38: #{dqn_mlp_forward.1} parent=0
    _
  %s10 = ssub.s32 1, %s8
  %s11 = scalar_select 0, %s10, %s8
  // Predicated region
  $region2: #{dqn_mlp_forward.1} parent=0 // pred_check
    _
  $region3: #{dqn_mlp_forward.1} parent=0 // pred_check_branch
    %13 = sbr.rel (0) target = $region5
  $region4: #{dqn_mlp_forward.1} parent=0 // pred_region
    _
  $region5: #{dqn_mlp_forward.1} parent=0 // pred_fallthru
    _
  // Predicated region
  $region6: #{dqn_mlp_forward.1} parent=0 // pred_check
    _
  $region7: #{dqn_mlp_forward.1} parent=0 // pred_check_branch
    %15 = sbr.rel (0) target = $region9
  $region8: #{dqn_mlp_forward.1} parent=0 // pred_region
    _
  $region9: #{dqn_mlp_forward.1} parent=0 // pred_fallthru
    _
  // Predicated region
  $region10: #{dqn_mlp_forward.1} parent=0 // pred_check
    _
  $region11: #{dqn_mlp_forward.1} parent=0 // pred_check_branch
    %17 = sbr.rel (0) target = $region13
  $region12: #{dqn_mlp_forward.1} parent=0 // pred_region
    _
  $region13: #{dqn_mlp_forward.1} parent=0 // pred_fallthru
    _
  // Predicated region
  $region14: #{dqn_mlp_forward.1} parent=0 // pred_check
    _
  $region15: #{dqn_mlp_forward.1} parent=0 // pred_check_branch
    %19 = sbr.rel (0) target = $region17
  $region16: #{dqn_mlp_forward.1} parent=0 // pred_region
    _
  $region17: #{dqn_mlp_forward.1} parent=0 // pred_fallthru
    _
  // Predicated region
  $region18: #{dqn_mlp_forward.1} parent=0 // pred_check
    _
  $region19: #{dqn_mlp_forward.1} parent=0 // pred_check_branch
    %21 = sbr.rel (0) target = $region21
  $region20: #{dqn_mlp_forward.1} parent=0 // pred_region
    _
  $region21: #{dqn_mlp_forward.1} parent=0 // pred_fallthru
    _
  // Predicated region
  $region22: #{dqn_mlp_forward.1} parent=0 // pred_check
    _
  $region23: #{dqn_mlp_forward.1} parent=0 // pred_check_branch
    %23 = sbr.rel (0) target = $region25
  $region24: #{dqn_mlp_forward.1} parent=0 // pred_region
    _
  $region25: #{dqn_mlp_forward.1} parent=0 // pred_fallthru
    _
  // Predicated region
  $region26: #{dqn_mlp_forward.1} parent=0 // pred_check
    _
  $region27: #{dqn_mlp_forward.1} parent=0 // pred_check_branch
    %25 = sbr.rel (0) target = $region29
  $region28: #{dqn_mlp_forward.1} parent=0 // pred_region
    _
  $region29: #{dqn_mlp_forward.1} parent=0 // pred_fallthru
    _
  %v27 = vld [vmem:[%s0] sm:$0xff]
  %v28 = vpack.c.bf16 %v27, %v27
  %v29 = vld [vmem:[%s1] sm:$0xf]
  %v30 = vld [vmem:[%s1 + $0x4] sm:$0xf]
  %v31 = vld [vmem:[%s2] sm:$0x1]
  %v33 = vperm.slane %v31, 0
  %v37 = vunpack.c.l.b16 %v29
  %v38 = vunpack.c.l.b16 %v30
  %v39 = vpack.c.b16 %v38, %v37
  %vm41 = vcmask 130048
  %v43 = vsel %vm41, %v28, 0
  %45 = vmatpush.bf16.msra.mxu0 0
  %46 = vmatpush.bf16.msra.mxu0 0
  %47 = vmatpush.bf16.msra.mxu0 0
  %48 = vmatpush.bf16.msra.mxu0 0
  %49 = vmatpush.bf16.msra.mxu0 0
  %50 = vmatpush.bf16.msra.mxu0 0
  %51 = vmatpush.bf16.msra.mxu0 0
  %52 = vmatpush.bf16.msra.mxu0 %v39
  %53 = vmatmul.bf16.gmra.mxu0 %v43
  %v54 = vpop.f32.mrf.mxu0
  %v55 = vadd.f32 %v33, %v54
  %v56 = vpop.f32.mrf.mxu0
  %57 = vdwg.mxu0
  %v58 = vmax.f32 %v55, 0.0
  %v59 = vpack.c.bf16 %v58, %v58
  %v60 = vld [vmem:[%s3] sm:$0xf]
  %v61 = vld [vmem:[%s3 + $0x4] sm:$0xf]
  %v62 = vld [vmem:[%s3 + $0x8] sm:$0xf]
  %v63 = vld [vmem:[%s3 + $0xc] sm:$0xf]
  %v64 = vld [vmem:[%s3 + $0x10] sm:$0xf]
  %v65 = vld [vmem:[%s3 + $0x14] sm:$0xf]
  %v66 = vld [vmem:[%s3 + $0x18] sm:$0xf]
  %v67 = vld [vmem:[%s3 + $0x1c] sm:$0xf]
  %v68 = vld [vmem:[%s3 + $0x20] sm:$0xf]
  %v69 = vld [vmem:[%s3 + $0x24] sm:$0xf]
  %v70 = vld [vmem:[%s3 + $0x28] sm:$0xf]
  %v71 = vld [vmem:[%s3 + $0x2c] sm:$0xf]
  %v72 = vld [vmem:[%s3 + $0x30] sm:$0xf]
  %v73 = vld [vmem:[%s3 + $0x34] sm:$0xf]
  %v74 = vld [vmem:[%s3 + $0x38] sm:$0xf]
  %v75 = vld [vmem:[%s3 + $0x3c] sm:$0xf]
  %v76 = vld [vmem:[%s4] sm:$0x1]
  %v78 = vperm.slane %v76, 0
  %v96 = vunpack.c.l.b16 %v60
  %v97 = vunpack.c.l.b16 %v61
  %v98 = vunpack.c.l.b16 %v62
  %v99 = vunpack.c.l.b16 %v63
  %v100 = vunpack.c.l.b16 %v64
  %v101 = vunpack.c.l.b16 %v65
  %v102 = vunpack.c.l.b16 %v66
  %v103 = vunpack.c.l.b16 %v67
  %v104 = vunpack.c.l.b16 %v68
  %v105 = vunpack.c.l.b16 %v69
  %v106 = vunpack.c.l.b16 %v70
  %v107 = vunpack.c.l.b16 %v71
  %v108 = vunpack.c.l.b16 %v72
  %v109 = vunpack.c.l.b16 %v73
  %v110 = vunpack.c.l.b16 %v74
  %v111 = vunpack.c.l.b16 %v75
  %v112 = vpack.c.b16 %v97, %v96
  %v113 = vpack.c.b16 %v99, %v98
  %v114 = vpack.c.b16 %v101, %v100
  %v115 = vpack.c.b16 %v103, %v102
  %v116 = vpack.c.b16 %v105, %v104
  %v117 = vpack.c.b16 %v107, %v106
  %v118 = vpack.c.b16 %v109, %v108
  %v119 = vpack.c.b16 %v111, %v110
  %128 = vmatpush.bf16.msra.mxu0 %v119
  %129 = vmatpush.bf16.msra.mxu0 %v118
  %130 = vmatpush.bf16.msra.mxu0 %v117
  %131 = vmatpush.bf16.msra.mxu0 %v116
  %132 = vmatpush.bf16.msra.mxu0 %v115
  %133 = vmatpush.bf16.msra.mxu0 %v114
  %134 = vmatpush.bf16.msra.mxu0 %v113
  %135 = vmatpush.bf16.msra.mxu0 %v112
  %136 = vmatmul.bf16.gmra.mxu0 %v59
  %v137 = vpop.f32.mrf.mxu0
  %v138 = vadd.f32 %v78, %v137
  %v139 = vpop.f32.mrf.mxu0
  %140 = vdwg.mxu0
  %v141 = vmax.f32 %v138, 0.0
  %v142 = vpack.c.bf16 %v141, %v141
  %v143 = vld [vmem:[%s5] sm:$0xf]
  %v144 = vld [vmem:[%s5 + $0x4] sm:$0xf]
  %v145 = vld [vmem:[%s5 + $0x8] sm:$0xf]
  %v146 = vld [vmem:[%s5 + $0xc] sm:$0xf]
  %v147 = vld [vmem:[%s5 + $0x10] sm:$0xf]
  %v148 = vld [vmem:[%s5 + $0x14] sm:$0xf]
  %v149 = vld [vmem:[%s5 + $0x18] sm:$0xf]
  %v150 = vld [vmem:[%s5 + $0x1c] sm:$0xf]
  %v151 = vld [vmem:[%s6] sm:$0x1]
  %v153 = vperm.slane %v151, 0
  %v163 = vunpack.c.l.b16 %v143
  %v164 = vunpack.c.l.b16 %v144
  %v165 = vunpack.c.l.b16 %v145
  %v166 = vunpack.c.l.b16 %v146
  %v167 = vunpack.c.l.b16 %v147
  %v168 = vunpack.c.l.b16 %v148
  %v169 = vunpack.c.l.b16 %v149
  %v170 = vunpack.c.l.b16 %v150
  %v171 = vpack.c.b16 %v164, %v163
  %v172 = vpack.c.b16 %v166, %v165
  %v173 = vpack.c.b16 %v168, %v167
  %v174 = vpack.c.b16 %v170, %v169
  %vm179 = vcmask 523264
  %v181 = vsel %vm179, %v142, 0
  %183 = vmatpush.bf16.msra.mxu0 0
  %184 = vmatpush.bf16.msra.mxu0 0
  %185 = vmatpush.bf16.msra.mxu0 0
  %186 = vmatpush.bf16.msra.mxu0 0
  %187 = vmatpush.bf16.msra.mxu0 %v174
  %188 = vmatpush.bf16.msra.mxu0 %v173
  %189 = vmatpush.bf16.msra.mxu0 %v172
  %190 = vmatpush.bf16.msra.mxu0 %v171
  %191 = vmatmul.bf16.gmra.mxu0 %v181
  %v192 = vpop.f32.mrf.mxu0
  %v193 = vadd.f32 %v153, %v192
  %v194 = vpop.f32.mrf.mxu0
  %195 = vdwg.mxu0
  %vm196 = vcmask 31744
  %197 = vst.msk [vmem:[%s7] sm:$0xff] %vm196, %v193
  // Predicated region
  $region30: #{dqn_mlp_forward.1} parent=0 // pred_check
    _
  $region31: #{dqn_mlp_forward.1} parent=0 // pred_check_branch
    %199 = sbr.rel (0) target = $region33
  $region32: #{dqn_mlp_forward.1} parent=0 // pred_region
    _
  $region33: #{dqn_mlp_forward.1} parent=0 // pred_fallthru
    _
  // Predicated region
  $region34: #{dqn_mlp_forward.1} parent=0 // pred_check
    _
  $region35: #{dqn_mlp_forward.1} parent=0 // pred_check_branch
    %201 = sbr.rel (0) target = $region37
  $region36: #{dqn_mlp_forward.1} parent=0 // pred_region
    _
  $region37: #{dqn_mlp_forward.1} parent=0 // pred_fallthru
    _

</llo_original>
